<compile_context>
chip_gen: v7x
topology: tpu7x:2x2x1
jax: 0.10.0
libtpu: 0.0.40
codegen_flags: <defaults>
</compile_context>

<pallas_src>
import functools

import jax
import jax.numpy as jnp
from jax import lax
from jax.experimental import pallas as pl
from jax.experimental.pallas import tpu as pltpu


def _round_up(x: int, m: int) -> int:
    return ((x + m - 1) // m) * m


def _cdiv(a: int, b: int) -> int:
    return (a + b - 1) // b


def _vmem_limit_bytes() -> int:
    """~3/4 of physical VMEM: ~48 MiB on v7x (64 MiB), ~96 MiB on v5e/v6e (128 MiB)."""
    phys = 64 * 1024 * 1024
    try:
        phys = int(getattr(pltpu.get_tpu_info(), "vmem_capacity_bytes", phys))
    except Exception:
        pass
    return int(min(max(phys * 3 // 4, 32 * 1024 * 1024), 100 * 1024 * 1024))


def _linear_relu_resident_kernel(x_ref, w_ref, b_ref, o_ref):
    """Whole-K tile: o = relu(x @ w + b). The W stripe stays VMEM-resident across the M sweep."""
    acc = jnp.dot(x_ref[...], w_ref[...], preferred_element_type=jnp.float32)
    acc = acc + b_ref[...].astype(jnp.float32)  # (1, tn) broadcasts over rows
    o_ref[...] = jnp.maximum(acc, 0.0).astype(o_ref.dtype)


def _linear_relu_ksplit_kernel(x_ref, w_ref, b_ref, o_ref):
    """K-reduction on grid axis 2; accumulate in the resident f32 output block (no scratch)."""
    k = pl.program_id(2)

    @pl.when(k == 0)
    def _init():
        o_ref[...] = jnp.zeros_like(o_ref)

    o_ref[...] += jnp.dot(x_ref[...], w_ref[...], preferred_element_type=jnp.float32)

    @pl.when(k == pl.num_programs(2) - 1)
    def _finalize():
        # Bias + ReLU only once per output tile, in f32 (safe on v5e's non-bf16 VPU).
        o_ref[...] = jnp.maximum(o_ref[...] + b_ref[...].astype(o_ref.dtype), 0.0)


@functools.partial(jax.jit, static_argnames=("tm", "tn", "tk", "compute_dtype"))
def mylayer_forward(x, weight, bias, *, tm=512, tn=512, tk=512, compute_dtype=None):
    """Pallas equivalent of Mylayer.forward: relu(x @ weight + bias). Output is float32."""
    M, K = x.shape
    K2, N = weight.shape
    assert K == K2, "in_feature mismatch"
    assert bias.shape == (N,), "bias shape mismatch"

    out_dtype = jnp.float32
    if compute_dtype is not None:
        x = x.astype(compute_dtype)
        weight = weight.astype(compute_dtype)
    in_bytes = x.dtype.itemsize
    m_min = 16 if in_bytes == 2 else 8  # (16,128) sublane tile for bf16, (8,128) for f32

    # MXU-friendly tile clamp: multiples of 128 for mid/large dims, minimal sublane tile otherwise.
    cap_m = _round_up(M, m_min)
    if cap_m > 64:
        cap_m = _round_up(cap_m, 128)
    tm = min(tm, cap_m)
    tn = min(tn, _round_up(N, 128))

    bias2d = bias.reshape(1, N)  # lane-dense 2-D bias
    vmem_limit = _vmem_limit_bytes()
    cost = pl.CostEstimate(
        flops=2 * M * N * K,
        transcendentals=0,
        bytes_accessed=(M * K + K * N) * in_bytes + (M * N + N) * 4,
    )

    # ---- Path A: whole-K, W-resident (typical linear-layer K) ----------------------------
    if K * in_bytes <= 8 * 1024:  # whole K-stripe of W (and X tile) fits comfortably in VMEM
        Kb = _round_up(K, 128)
        if Kb != K:  # pad only K (cheap; M/N are never padded)
            x = jnp.pad(x, ((0, 0), (0, Kb - K)))
            weight = jnp.pad(weight, ((0, Kb - K), (0, 0)))

        gi, gj = _cdiv(M, tm), _cdiv(N, tn)
        if gi * gj == 1:  # keep both v7x TensorCores busy when possible
            if tm >= 256:
                tm //= 2
            elif tn >= 256:
                tn //= 2
            gi, gj = _cdiv(M, tm), _cdiv(N, tn)

        return pl.pallas_call(
            _linear_relu_resident_kernel,
            out_shape=jax.ShapeDtypeStruct((M, N), out_dtype),
            grid=(gj, gi),  # j outer, i inner -> W block (0, j) is not re-fetched across i
            in_specs=[
                pl.BlockSpec((tm, Kb), lambda j, i: (i, 0)),  # X tile (full K)
                pl.BlockSpec((Kb, tn), lambda j, i: (0, j)),  # W stripe (resident)
                pl.BlockSpec((1, tn), lambda j, i: (0, j)),   # bias tile
            ],
            out_specs=pl.BlockSpec((tm, tn), lambda j, i: (i, j)),
            compiler_params=pltpu.CompilerParams(
                dimension_semantics=("parallel", "parallel"),
                vmem_limit_bytes=vmem_limit,
            ),
            cost_estimate=cost,
        )(x, weight, bias2d)

    # ---- Path B: K-split reduction grid ---------------------------------------------------
    tk = min(tk, _round_up(K, 128))
    Kp = _round_up(K, tk)
    if Kp != K:  # pad only K so the zero remainder cannot corrupt the reduction
        x = jnp.pad(x, ((0, 0), (0, Kp - K)))
        weight = jnp.pad(weight, ((0, Kp - K), (0, 0)))

    gi, gj, gk = _cdiv(M, tm), _cdiv(N, tn), Kp // tk
    if gi * gj == 1:  # megacore: ensure >=2 blocks on a parallel axis when possible
        if tm >= 256:
            tm //= 2
        elif tn >= 256:
            tn //= 2
        gi, gj = _cdiv(M, tm), _cdiv(N, tn)

    return pl.pallas_call(
        _linear_relu_ksplit_kernel,
        out_shape=jax.ShapeDtypeStruct((M, N), out_dtype),
        grid=(gi, gj, gk),  # reduction axis last
        in_specs=[
            pl.BlockSpec((tm, tk), lambda i, j, k: (i, k)),  # X tile
            pl.BlockSpec((tk, tn), lambda i, j, k: (k, j)),  # W tile
            pl.BlockSpec((1, tn), lambda i, j, k: (0, j)),   # bias tile
        ],
        out_specs=pl.BlockSpec((tm, tn), lambda i, j, k: (i, j)),  # resident f32 accumulator
        compiler_params=pltpu.CompilerParams(
            dimension_semantics=("parallel", "parallel", "arbitrary"),
            vmem_limit_bytes=vmem_limit,
        ),
        cost_estimate=cost,
    )(x, weight, bias2d)


if __name__ == "__main__":
    key = jax.random.PRNGKey(0)

    # 1) Shapes matching the module's example usage: X = torch.rand(4, 8), Mylayer(8, 16).
    batch, in_feature, out_feature = 4, 8, 16
    kx, kw, kb = jax.random.split(key, 3)
    x = jax.random.uniform(kx, (batch, in_feature), dtype=jnp.float32)
    w = jax.random.normal(kw, (in_feature, out_feature), dtype=jnp.float32)
    b = jax.random.normal(kb, (out_feature,), dtype=jnp.float32)
    out = jax.block_until_ready(mylayer_forward(x, w, b))
    ref = jnp.maximum(jnp.dot(x, w, precision=lax.Precision.HIGHEST) + b, 0.0)
    assert out.shape == (batch, out_feature)
    assert jnp.allclose(out, ref, atol=1e-3, rtol=1e-3), "mismatch (small / W-resident)"

    # 2) Larger case: W-resident path + megacore tile split.
    M2, K2, N2 = 512, 384, 256
    k2x, k2w, k2b = jax.random.split(jax.random.PRNGKey(1), 3)
    x2 = jax.random.normal(k2x, (M2, K2), dtype=jnp.float32)
    w2 = jax.random.normal(k2w, (K2, N2), dtype=jnp.float32)
    b2 = jax.random.normal(k2b, (N2,), dtype=jnp.float32)
    out2 = jax.block_until_ready(mylayer_forward(x2, w2, b2))
    ref2 = jnp.maximum(jnp.dot(x2, w2, precision=lax.Precision.HIGHEST) + b2, 0.0)
    assert out2.shape == (M2, N2)
    assert jnp.allclose(out2, ref2, atol=1e-2, rtol=1e-2), "mismatch (W-resident large)"

    # 3) Large-K case: K-split accumulator path with ragged M/N edges and K padding.
    M3, K3, N3 = 300, 2100, 200
    k3x, k3w, k3b = jax.random.split(jax.random.PRNGKey(2), 3)
    x3 = jax.random.normal(k3x, (M3, K3), dtype=jnp.float32)
    w3 = jax.random.normal(k3w, (K3, N3), dtype=jnp.float32)
    b3 = jax.random.normal(k3b, (N3,), dtype=jnp.float32)
    out3 = jax.block_until_ready(mylayer_forward(x3, w3, b3))
    ref3 = jnp.maximum(jnp.dot(x3, w3, precision=lax.Precision.HIGHEST) + b3, 0.0)
    assert out3.shape == (M3, N3)
    assert jnp.allclose(out3, ref3, atol=5e-2, rtol=2e-2), "mismatch (K-split)"

    # 4) bf16 compute path (f32 accumulation), compared against a bf16-cast reference.
    out4 = jax.block_until_ready(mylayer_forward(x2, w2, b2, compute_dtype=jnp.bfloat16))
    xb = x2.astype(jnp.bfloat16).astype(jnp.float32)
    wb = w2.astype(jnp.bfloat16).astype(jnp.float32)
    ref4 = jnp.maximum(jnp.dot(xb, wb, precision=lax.Precision.HIGHEST) + b2, 0.0)
    assert jnp.allclose(out4, ref4, atol=1e-2, rtol=1e-2), "mismatch (bf16 compute)"

    print("KERNEL_OK")
</pallas_src>

<mosaic_0001>
module attributes {stable_mosaic.version = 11 : i64} {
  func.func @_linear_relu_resident_kernel(%arg0: i32, %arg1: i32, %arg2: memref<8x128xf32, #tpu.memory_space<vmem>>, %arg3: memref<128x128xf32, #tpu.memory_space<vmem>>, %arg4: memref<1x128xf32, #tpu.memory_space<vmem>>, %arg5: memref<8x128xf32, #tpu.memory_space<vmem>>) attributes {dimension_semantics = [#tpu.dimension_semantics<parallel>, #tpu.dimension_semantics<parallel>], iteration_bounds = array<i64: 1, 1>, scalar_prefetch = 0 : i64, scratch_operands = 0 : i64, tpu.core_type = #tpu.core_type<tc>, window_params = [{transform_indices = @transform_0, window_bounds = array<i64: 8, 128>}, {transform_indices = @transform_1, window_bounds = array<i64: 128, 128>}, {transform_indices = @transform_2, window_bounds = array<i64: 1, 128>}, {transform_indices = @transform_3, window_bounds = array<i64: 8, 128>}]} {
    %c0 = arith.constant 0 : index
    %c0_0 = arith.constant 0 : index
    %0 = vector.load %arg2[%c0, %c0_0] : memref<8x128xf32, #tpu.memory_space<vmem>>, vector<8x128xf32>
    %c0_1 = arith.constant 0 : index
    %c0_2 = arith.constant 0 : index
    %1 = vector.load %arg3[%c0_1, %c0_2] : memref<128x128xf32, #tpu.memory_space<vmem>>, vector<128x128xf32>
    %cst = arith.constant dense<0.000000e+00> : vector<8x128xf32>
    %2 = tpu.matmul %0, %1, %cst {dimension_numbers = #tpu.dot_dimension_numbers<[1], [0], [0], [1], [0, 0, 1, 1], [], []>} : vector<8x128xf32>, vector<128x128xf32>, vector<8x128xf32> -> vector<8x128xf32>
    %c0_3 = arith.constant 0 : index
    %c0_4 = arith.constant 0 : index
    %3 = vector.load %arg4[%c0_3, %c0_4] : memref<1x128xf32, #tpu.memory_space<vmem>>, vector<1x128xf32>
    %4 = vector.broadcast %3 : vector<1x128xf32> to vector<8x128xf32>
    %5 = arith.addf %2, %4 : vector<8x128xf32>
    %cst_5 = arith.constant 0.000000e+00 : f32
    %6 = vector.broadcast %cst_5 : f32 to vector<8x128xf32>
    %7 = arith.maximumf %5, %6 : vector<8x128xf32>
    %c0_6 = arith.constant 0 : index
    %c0_7 = arith.constant 0 : index
    %8 = vector.load %arg5[%c0_6, %c0_7] : memref<8x128xf32, #tpu.memory_space<vmem>>, vector<8x128xf32>
    tpu.vector_store %arg5[%c0_6, %c0_7], %7 {strides = array<i32>} : memref<8x128xf32, #tpu.memory_space<vmem>>, vector<8x128xf32>,
    return
  }
  func.func @transform_0(%arg0: i32, %arg1: i32) -> (i32, i32) {
    %c0_i32 = arith.constant 0 : i32
    %c0_i32_0 = arith.constant 0 : i32
    return %arg1, %c0_i32 : i32, i32
  }
  func.func @transform_1(%arg0: i32, %arg1: i32) -> (i32, i32) {
    %c0_i32 = arith.constant 0 : i32
    %c0_i32_0 = arith.constant 0 : i32
    return %c0_i32, %arg0 : i32, i32
  }
  func.func @transform_2(%arg0: i32, %arg1: i32) -> (i32, i32) {
    %c0_i32 = arith.constant 0 : i32
    %c0_i32_0 = arith.constant 0 : i32
    return %c0_i32, %arg0 : i32, i32
  }
  func.func @transform_3(%arg0: i32, %arg1: i32) -> (i32, i32) {
    %c0_i32 = arith.constant 0 : i32
    return %arg1, %arg0 : i32, i32
  }
}

</mosaic_0001>

<llo_original>
// kernel: mylayer_forward.1
$region0: #{mylayer_forward.1}
  #allocation0 [shape = 'u32[]', space=smem, size = 0x4, offset = 0x4, fixed_abs, tag = 'smem constant byte address 0x4 - core index']
  #allocation1 [shape = 'u32[144,128]{1,0:T(1,128)}', space=vmem, size = 0x12000, scoped, tag = 'internal scratch']
  %s0 = inlined_call_operand.vmem [shape: f32[4,128], index: 0, kind: input, shape index: {}]
  %s1 = inlined_call_operand.vmem [shape: f32[128,16], index: 1, kind: input, shape index: {}]
  %s2 = inlined_call_operand.vmem [shape: f32[1,16], index: 2, kind: input, shape index: {}]
  %s3 = inlined_call_operand.hbm [shape: f32[4,16], index: 3, kind: output, shape index: {}]
  %s4 = sld [smem:[#allocation0]]
  $region22: #{mylayer_forward.1} parent=0
    _
  %s6 = ssub.s32 1, %s4
  %s7 = scalar_select 0, %s6, %s4
  $region1: #{mylayer_forward.1} parent=0
    #allocation2 [shape = 'u8[4096]{0}', space=vmem, size = 0x1000, scoped, tag = 'output window, operand 0, single buffered']
    #allocation3 [shape = 's32[1]{0}', space=sflag, size = 0x4, scoped, tag = 'scoped memory for mylayer_forward.1']
    %8 = vsyncpa [#allocation3], 0
    // Predicated region
    $region2: #{mylayer_forward.1} parent=1 // pred_check
      _
    $region3: #{mylayer_forward.1} parent=1 // pred_check_branch
      %10 = sbr.rel (0) target = $region5
    $region4: #{mylayer_forward.1} parent=1 // pred_region
      _
    $region5: #{mylayer_forward.1} parent=1 // pred_fallthru
      _
    // Predicated region
    $region6: #{mylayer_forward.1} parent=1 // pred_check
      _
    $region7: #{mylayer_forward.1} parent=1 // pred_check_branch
      %12 = sbr.rel (0) target = $region9
    $region8: #{mylayer_forward.1} parent=1 // pred_region
      _
    $region9: #{mylayer_forward.1} parent=1 // pred_fallthru
      _
    // Predicated region
    $region10: #{mylayer_forward.1} parent=1 // pred_check
      _
    $region11: #{mylayer_forward.1} parent=1 // pred_check_branch
      %14 = sbr.rel (0) target = $region13
    $region12: #{mylayer_forward.1} parent=1 // pred_region
      _
    $region13: #{mylayer_forward.1} parent=1 // pred_fallthru
      _
    %v15 = vld [vmem:[%s0] sm:$0xff]
    %v16 = vld [vmem:[%s1] sm:$0xff]
    %v17 = vld [vmem:[%s1 + $0x8] sm:$0xff]
    %v18 = vld [vmem:[%s1 + $0x10] sm:$0xff]
    %v19 = vld [vmem:[%s1 + $0x18] sm:$0xff]
    %v20 = vld [vmem:[%s1 + $0x20] sm:$0xff]
    %v21 = vld [vmem:[%s1 + $0x28] sm:$0xff]
    %v22 = vld [vmem:[%s1 + $0x30] sm:$0xff]
    %v23 = vld [vmem:[%s1 + $0x38] sm:$0xff]
    %v24 = vld [vmem:[%s1 + $0x40] sm:$0xff]
    %v25 = vld [vmem:[%s1 + $0x48] sm:$0xff]
    %v26 = vld [vmem:[%s1 + $0x50] sm:$0xff]
    %v27 = vld [vmem:[%s1 + $0x58] sm:$0xff]
    %v28 = vld [vmem:[%s1 + $0x60] sm:$0xff]
    %v29 = vld [vmem:[%s1 + $0x68] sm:$0xff]
    %v30 = vld [vmem:[%s1 + $0x70] sm:$0xff]
    %v31 = vld [vmem:[%s1 + $0x78] sm:$0xff]
    %v32 = vld [vmem:[%s2] sm:$0x1]
    %v34 = vlaneseq
    %v35 = vshrl.u32 %v34, 7
    %v36 = vsub.s32 0, %v35
    %v37 = vrot.slane %v32, %v36
    %39 = vmatprep.subr.mxu0 0.0
    %40 = vmatpush1.msra.mxu0 %v16
    %41 = vmatprep.subr.mxu0 0.0
    %42 = vmatpush1.msra.mxu0 %v17
    %43 = vmatprep.subr.mxu0 0.0
    %44 = vmatpush1.msra.mxu0 %v18
    %45 = vmatprep.subr.mxu0 0.0
    %46 = vmatpush1.msra.mxu0 %v19
    %47 = vmatprep.subr.mxu0 0.0
    %48 = vmatpush1.msra.mxu0 %v20
    %49 = vmatprep.subr.mxu0 0.0
    %50 = vmatpush1.msra.mxu0 %v21
    %51 = vmatprep.subr.mxu0 0.0
    %52 = vmatpush1.msra.mxu0 %v22
    %53 = vmatprep.subr.mxu0 0.0
    %54 = vmatpush1.msra.mxu0 %v23
    %55 = vmatprep.subr.mxu0 0.0
    %56 = vmatpush1.msra.mxu0 %v24
    %57 = vmatprep.subr.mxu0 0.0
    %58 = vmatpush1.msra.mxu0 %v25
    %59 = vmatprep.subr.mxu0 0.0
    %60 = vmatpush1.msra.mxu0 %v26
    %61 = vmatprep.subr.mxu0 0.0
    %62 = vmatpush1.msra.mxu0 %v27
    %63 = vmatprep.subr.mxu0 0.0
    %64 = vmatpush1.msra.mxu0 %v28
    %65 = vmatprep.subr.mxu0 0.0
    %66 = vmatpush1.msra.mxu0 %v29
    %67 = vmatprep.subr.mxu0 0.0
    %68 = vmatpush1.msra.mxu0 %v30
    %69 = vmatprep.subr.mxu0 0.0
    %70 = vmatpush1.msra.mxu0 %v31
    %71 = vmatprep.subr.mxu0 0.0
    %72 = vmatpush1.msra.mxu0 0.0
    %73 = vmatprep.subr.mxu0 0.0
    %74 = vmatpush1.msra.mxu0 0.0
    %75 = vmatprep.subr.mxu0 0.0
    %76 = vmatpush1.msra.mxu0 0.0
    %77 = vmatprep.subr.mxu0 0.0
    %78 = vmatpush1.msra.mxu0 0.0
    %79 = vmatprep.subr.mxu0 0.0
    %80 = vmatpush1.msra.mxu0 0.0
    %81 = vmatprep.subr.mxu0 0.0
    %82 = vmatpush1.msra.mxu0 0.0
    %83 = vmatprep.subr.mxu0 0.0
    %84 = vmatpush1.msra.mxu0 0.0
    %85 = vmatprep.subr.mxu0 0.0
    %86 = vmatpush1.msra.mxu0 0.0
    %87 = vmatprep.subr.mxu0 0.0
    %88 = vmatpush1.msra.mxu0 0.0
    %89 = vmatprep.subr.mxu0 0.0
    %90 = vmatpush1.msra.mxu0 0.0
    %91 = vmatprep.subr.mxu0 0.0
    %92 = vmatpush1.msra.mxu0 0.0
    %93 = vmatprep.subr.mxu0 0.0
    %94 = vmatpush1.msra.mxu0 0.0
    %95 = vmatprep.subr.mxu0 0.0
    %96 = vmatpush1.msra.mxu0 0.0
    %97 = vmatprep.subr.mxu0 0.0
    %98 = vmatpush1.msra.mxu0 0.0
    %99 = vmatprep.subr.mxu0 0.0
    %100 = vmatpush1.msra.mxu0 0.0
    %101 = vmatprep.subr.mxu0 0.0
    %102 = vmatpush1.msra.mxu0 0.0
    %103 = vmatprep.mubr.f32.mxu0 0.0
    %104 = vmatmul.mubr.f32.gmra.mrb[0].mxu0 %v15
    %v105 = vpop.f32.mrb[0].mxu0
    %v106 = vadd.f32 %v37, %v105
    %v107 = vpop.f32.mrb[0].mxu0
    %108 = vdwg.mxu0
    %v109 = vmax.f32 %v106, 0.0
    %110 = vst [vmem:[#allocation2] sm:$0xff] %v109
    // Predicated region
    $region14: #{mylayer_forward.1} parent=1 // pred_check
      _
    $region15: #{mylayer_forward.1} parent=1 // pred_check_branch
      %112 = sbr.rel (0) target = $region17
    $region16: #{mylayer_forward.1} parent=1 // pred_region
      %s114 = ssub.s32 128, 64
      %115 = vsyncadd [#allocation3], %s114
      %s116 = sshll.u32 [#allocation2], 4
      %s117 = int_to_ptr.vmem [resolvable:$true] %s116
      %122 = dma.vmem_to_hbm [thread:$0]  %s117, 64, %s3, [#allocation3], 64, 64, 4
    $region17: #{mylayer_forward.1} parent=1 // pred_fallthru
      _
    // Predicated region
    $region18: #{mylayer_forward.1} parent=1 // pred_check
      _
    $region19: #{mylayer_forward.1} parent=1 // pred_check_branch
      %124 = sbr.rel (0) target = $region21
    $region20: #{mylayer_forward.1} parent=1 // pred_region
      %125 = dma.done [#allocation3], 128
    $region21: #{mylayer_forward.1} parent=1 // pred_fallthru
      _
    %126 = vsyncpa [#allocation3], 1

</llo_original>
